<compile_context>
chip_gen: v7x
topology: tpu7x:2x2x1
jax: 0.10.0
libtpu: 0.0.40
codegen_flags: <defaults>
</compile_context>

<pallas_src>
import functools

import jax
import jax.numpy as jnp
from jax.experimental import pallas as pl
from jax.experimental.pallas import tpu as pltpu

LANE = 128


def _round_up(x, m):
    return (x + m - 1) // m * m


def qnetwork_kernel(x_ref, w1_ref, b1_ref, w2_ref, b2_ref, o_ref, *, mxu_dtype):
    # Cast x in-kernel (free: fused with the load; no extra HBM pass) so the
    # MXU runs at bf16 rate when requested; accumulation is always f32.
    x = x_ref[...].astype(mxu_dtype)
    h = jnp.dot(x, w1_ref[...], preferred_element_type=jnp.float32)
    # Bias + ReLU in f32 on the VPU (v5e has no bf16 VALU).
    h = jnp.maximum(h + b1_ref[...], 0.0)
    # Layer 2: w2 is lane-padded to 128 for a full-width MXU pass, but only the
    # real action columns are stored (masked vst on the tiny last dim is
    # negligible next to the matmul and saves ~32x HBM writeback).
    h = h.astype(w2_ref.dtype)
    out = jnp.dot(h, w2_ref[...], preferred_element_type=jnp.float32)
    n_real = o_ref.shape[-1]
    o_ref[...] = (out[:, :n_real] + b2_ref[...]).astype(o_ref.dtype)


def prepare_qnetwork_params(w1, b1, w2, b2, *, compute_dtype=jnp.float32):
    """One-time parameter prep (hoisted out of the forward path).

    w1: [in_dim, hidden], b1: [hidden] or [1, hidden]
    w2: [hidden, action_size], b2: [action_size] or [1, action_size]
    Returns (w1, b1, w2_padded_to_128_lanes, b2) with weights in
    `compute_dtype` and biases in f32.
    """
    in_dim, hidden = w1.shape
    action_size = w2.shape[1]
    n_pad = _round_up(action_size, LANE)
    w2p = jnp.zeros((hidden, n_pad), compute_dtype)
    w2p = w2p.at[:, :action_size].set(w2.astype(compute_dtype))
    return (
        w1.astype(compute_dtype),
        b1.astype(jnp.float32).reshape(1, hidden),
        w2p,
        b2.astype(jnp.float32).reshape(1, action_size),
    )


def qnetwork_forward(x, params, *, block_batch=2048):
    """y = relu(x @ w1 + b1) @ w2 + b2 with params from prepare_qnetwork_params.

    x: [B, obs_size + 2] float32 (or bf16).  Returns [B, action_size] float32.
    """
    w1, b1, w2p, b2 = params
    batch, in_dim = x.shape
    hidden = w1.shape[1]
    n_pad = w2p.shape[1]
    action_size = b2.shape[1]
    mxu_dtype = w1.dtype  # streaming/compute dtype chosen at param-prep time

    # Batch tile: multiple of 8 sublanes; no jnp.pad of x -- ragged last tile
    # is handled by Pallas' block-boundary masking.
    tb = min(block_batch, _round_up(batch, 8))
    # Guarantee >=2 grid steps for large batches so the "parallel" axis can
    # actually be split across v7x's two TensorCores (no-op on v5e/v6e).
    if batch >= 2048:
        tb = min(tb, _round_up(pl.cdiv(batch, 2), 16))
    grid = (pl.cdiv(batch, tb),)

    out = pl.pallas_call(
        functools.partial(qnetwork_kernel, mxu_dtype=mxu_dtype),
        # Narrow (un-padded) output: only the real action columns hit HBM.
        out_shape=jax.ShapeDtypeStruct((batch, action_size), jnp.float32),
        grid_spec=pltpu.PrefetchScalarGridSpec(
            num_scalar_prefetch=0,
            grid=grid,
            in_specs=[
                # Streamed batch tile: auto double-buffered across the grid.
                pl.BlockSpec((tb, in_dim), lambda i: (i, 0)),
                # Grid-invariant weights/biases: DMA'd once, VMEM-resident.
                pl.BlockSpec((in_dim, hidden), lambda i: (0, 0)),
                pl.BlockSpec((1, hidden), lambda i: (0, 0)),
                pl.BlockSpec((hidden, n_pad), lambda i: (0, 0)),
                pl.BlockSpec((1, action_size), lambda i: (0, 0)),
            ],
            out_specs=pl.BlockSpec((tb, action_size), lambda i: (i, 0)),
        ),
        compiler_params=pltpu.CompilerParams(
            dimension_semantics=("parallel",),
        ),
    )(x, w1, b1, w2p, b2)
    return out


def init_qnetwork_params(key, obs_size, action_size, hidden=128):
    """Deterministic init mimicking PyTorch's default Linear init
    (uniform(-1/sqrt(fan_in), 1/sqrt(fan_in))).  Weights stored [in, out]."""
    in_dim = obs_size + 2
    k1, k2, k3, k4 = jax.random.split(key, 4)
    bound1 = 1.0 / jnp.sqrt(jnp.float32(in_dim))
    bound2 = 1.0 / jnp.sqrt(jnp.float32(hidden))
    w1 = jax.random.uniform(k1, (in_dim, hidden), jnp.float32, -bound1, bound1)
    b1 = jax.random.uniform(k2, (1, hidden), jnp.float32, -bound1, bound1)
    w2 = jax.random.uniform(k3, (hidden, action_size), jnp.float32, -bound2, bound2)
    b2 = jax.random.uniform(k4, (1, action_size), jnp.float32, -bound2, bound2)
    return w1, b1, w2, b2


if __name__ == "__main__":
    # Small shapes consistent with the module: obs_size=14 -> input dim 16,
    # hidden=128 (fixed by the module), action_size=4, batch=8.
    obs_size = 14
    action_size = 4
    batch = 8

    key = jax.random.PRNGKey(0)
    k_x, k_p = jax.random.split(key)
    x = jax.random.normal(k_x, (batch, obs_size + 2), dtype=jnp.float32)
    w1, b1, w2, b2 = init_qnetwork_params(k_p, obs_size, action_size)
    ref_fn = lambda xx: jnp.maximum(xx @ w1 + b1, 0.0) @ w2 + b2

    # f32 path (training-grade numerics); params prepared once, reused.
    params_f32 = prepare_qnetwork_params(w1, b1, w2, b2)
    out = qnetwork_forward(x, params_f32)
    jax.block_until_ready(out)
    assert out.shape == (batch, action_size)
    assert jnp.allclose(out, ref_fn(x), atol=1e-5, rtol=1e-5)

    # Ragged-batch path (batch not a multiple of 8 -> masked last-tile write).
    x2 = jax.random.normal(jax.random.fold_in(k_x, 1), (5, obs_size + 2),
                           dtype=jnp.float32)
    out2 = qnetwork_forward(x2, params_f32)
    jax.block_until_ready(out2)
    assert out2.shape == (5, action_size)
    assert jnp.allclose(out2, ref_fn(x2), atol=1e-5, rtol=1e-5)

    # bf16 streaming path (v6e/v7x inference): weights bf16, x cast in-kernel,
    # f32 MXU accumulation, loose tolerance (hidden activation is bf16).
    params_bf16 = prepare_qnetwork_params(w1, b1, w2, b2,
                                          compute_dtype=jnp.bfloat16)
    out_bf16 = qnetwork_forward(x, params_bf16)
    jax.block_until_ready(out_bf16)
    assert jnp.allclose(out_bf16, ref_fn(x), atol=5e-2, rtol=5e-2)

    print("KERNEL_OK")
</pallas_src>

<mosaic_0001>
module attributes {stable_mosaic.version = 11 : i64} {
  func.func @qnetwork_kernel(%arg0: i32, %arg1: memref<8x16xf32, #tpu.memory_space<vmem>>, %arg2: memref<16x128xf32, #tpu.memory_space<vmem>>, %arg3: memref<1x128xf32, #tpu.memory_space<vmem>>, %arg4: memref<128x128xf32, #tpu.memory_space<vmem>>, %arg5: memref<1x4xf32, #tpu.memory_space<vmem>>, %arg6: memref<8x4xf32, #tpu.memory_space<vmem>>) attributes {dimension_semantics = [#tpu.dimension_semantics<parallel>], iteration_bounds = array<i64: 1>, scalar_prefetch = 0 : i64, scratch_operands = 0 : i64, tpu.core_type = #tpu.core_type<tc>, window_params = [{transform_indices = @transform_0, window_bounds = array<i64: 8, 16>}, {pipeline_mode = #tpu.pipeline_mode<synchronous>, transform_indices = @transform_1, window_bounds = array<i64: 16, 128>}, {pipeline_mode = #tpu.pipeline_mode<synchronous>, transform_indices = @transform_2, window_bounds = array<i64: 1, 128>}, {pipeline_mode = #tpu.pipeline_mode<synchronous>, transform_indices = @transform_3, window_bounds = array<i64: 128, 128>}, {pipeline_mode = #tpu.pipeline_mode<synchronous>, transform_indices = @transform_4, window_bounds = array<i64: 1, 4>}, {transform_indices = @transform_5, window_bounds = array<i64: 8, 4>}]} {
    %c0 = arith.constant 0 : index
    %c0_0 = arith.constant 0 : index
    %0 = vector.load %arg1[%c0, %c0_0] : memref<8x16xf32, #tpu.memory_space<vmem>>, vector<8x16xf32>
    %c0_1 = arith.constant 0 : index
    %c0_2 = arith.constant 0 : index
    %1 = vector.load %arg2[%c0_1, %c0_2] : memref<16x128xf32, #tpu.memory_space<vmem>>, vector<16x128xf32>
    %cst = arith.constant dense<0.000000e+00> : vector<8x128xf32>
    %2 = tpu.matmul %0, %1, %cst {dimension_numbers = #tpu.dot_dimension_numbers<[1], [0], [0], [1], [0, 0, 1, 1], [], []>} : vector<8x16xf32>, vector<16x128xf32>, vector<8x128xf32> -> vector<8x128xf32>
    %c0_3 = arith.constant 0 : index
    %c0_4 = arith.constant 0 : index
    %3 = vector.load %arg3[%c0_3, %c0_4] : memref<1x128xf32, #tpu.memory_space<vmem>>, vector<1x128xf32>
    %4 = vector.broadcast %3 : vector<1x128xf32> to vector<8x128xf32>
    %5 = arith.addf %2, %4 : vector<8x128xf32>
    %cst_5 = arith.constant 0.000000e+00 : f32
    %6 = vector.broadcast %cst_5 : f32 to vector<8x128xf32>
    %7 = arith.maximumf %5, %6 : vector<8x128xf32>
    %c0_6 = arith.constant 0 : index
    %c0_7 = arith.constant 0 : index
    %8 = vector.load %arg4[%c0_6, %c0_7] : memref<128x128xf32, #tpu.memory_space<vmem>>, vector<128x128xf32>
    %cst_8 = arith.constant dense<0.000000e+00> : vector<8x128xf32>
    %9 = tpu.matmul %7, %8, %cst_8 {dimension_numbers = #tpu.dot_dimension_numbers<[1], [0], [0], [1], [0, 0, 1, 1], [], []>} : vector<8x128xf32>, vector<128x128xf32>, vector<8x128xf32> -> vector<8x128xf32>
    %10 = vector.extract_strided_slice %9 {offsets = [0, 0], sizes = [8, 4], strides = [1, 1]} : vector<8x128xf32> to vector<8x4xf32>
    %c0_9 = arith.constant 0 : index
    %c0_10 = arith.constant 0 : index
    %11 = vector.load %arg5[%c0_9, %c0_10] : memref<1x4xf32, #tpu.memory_space<vmem>>, vector<1x4xf32>
    %12 = vector.broadcast %11 : vector<1x4xf32> to vector<8x4xf32>
    %13 = arith.addf %10, %12 : vector<8x4xf32>
    %c0_11 = arith.constant 0 : index
    %c0_12 = arith.constant 0 : index
    %14 = vector.load %arg6[%c0_11, %c0_12] : memref<8x4xf32, #tpu.memory_space<vmem>>, vector<8x4xf32>
    tpu.vector_store %arg6[%c0_11, %c0_12], %13 {strides = array<i32>} : memref<8x4xf32, #tpu.memory_space<vmem>>, vector<8x4xf32>,
    return
  }
  func.func @transform_0(%arg0: i32) -> (i32, i32) {
    %c0_i32 = arith.constant 0 : i32
    %c0_i32_0 = arith.constant 0 : i32
    return %arg0, %c0_i32 : i32, i32
  }
  func.func @transform_1(%arg0: i32) -> (i32, i32) {
    %c0_i32 = arith.constant 0 : i32
    %c0_i32_0 = arith.constant 0 : i32
    %c0_i32_1 = arith.constant 0 : i32
    return %c0_i32, %c0_i32_0 : i32, i32
  }
  func.func @transform_2(%arg0: i32) -> (i32, i32) {
    %c0_i32 = arith.constant 0 : i32
    %c0_i32_0 = arith.constant 0 : i32
    %c0_i32_1 = arith.constant 0 : i32
    return %c0_i32, %c0_i32_0 : i32, i32
  }
  func.func @transform_3(%arg0: i32) -> (i32, i32) {
    %c0_i32 = arith.constant 0 : i32
    %c0_i32_0 = arith.constant 0 : i32
    %c0_i32_1 = arith.constant 0 : i32
    return %c0_i32, %c0_i32_0 : i32, i32
  }
  func.func @transform_4(%arg0: i32) -> (i32, i32) {
    %c0_i32 = arith.constant 0 : i32
    %c0_i32_0 = arith.constant 0 : i32
    %c0_i32_1 = arith.constant 0 : i32
    return %c0_i32, %c0_i32_0 : i32, i32
  }
  func.func @transform_5(%arg0: i32) -> (i32, i32) {
    %c0_i32 = arith.constant 0 : i32
    %c0_i32_0 = arith.constant 0 : i32
    return %arg0, %c0_i32 : i32, i32
  }
}

</mosaic_0001>

<llo_original>
// kernel: tpu_custom_call.1
$region0: #{tpu_custom_call.1}
  #allocation0 [shape = 'u32[]', space=smem, size = 0x4, offset = 0x4, fixed_abs, tag = 'smem constant byte address 0x4 - core index']
  #allocation1 [shape = 'u32[144,128]{1,0:T(1,128)}', space=vmem, size = 0x12000, scoped, tag = 'internal scratch']
  %s0 = inlined_call_operand.hbm [shape: f32[8,16], index: 0, kind: input, shape index: {}]
  %s1 = inlined_call_operand.hbm [shape: f32[16,128], index: 1, kind: input, shape index: {}]
  %s2 = inlined_call_operand.vmem [shape: f32[1,128], index: 2, kind: input, shape index: {}]
  %s3 = inlined_call_operand.hbm [shape: f32[128,128], index: 3, kind: input, shape index: {}]
  %s4 = inlined_call_operand.vmem [shape: f32[1,4], index: 4, kind: input, shape index: {}]
  %s5 = inlined_call_operand.vmem [shape: f32[8,4], index: 5, kind: output, shape index: {}]
  %s6 = sld [smem:[#allocation0]]
  $region42: #{tpu_custom_call.1} parent=0
    _
  %s8 = ssub.s32 1, %s6
  %s9 = scalar_select 0, %s8, %s6
  $region1: #{tpu_custom_call.1} parent=0
    #allocation2 [shape = 'u8[4096]{0}', space=vmem, size = 0x1000, scoped, tag = 'input window, operand 0, single buffered']
    #allocation3 [shape = 's32[1]{0}', space=sflag, size = 0x4, scoped, tag = 'scoped memory for tpu_custom_call.1']
    #allocation4 [shape = 'u8[8192]{0}', space=vmem, size = 0x2000, scoped, tag = 'input window, operand 1, single buffered']
    #allocation5 [shape = 's32[1]{0}', space=sflag, size = 0x4, scoped, tag = 'scoped memory for tpu_custom_call.1']
    #allocation6 [shape = 'u8[65536]{0}', space=vmem, size = 0x10000, scoped, tag = 'input window, operand 3, single buffered']
    %10 = vsyncpa [#allocation3], 0
    %11 = vsyncpa [#allocation5], 0
    // Predicated region
    $region2: #{tpu_custom_call.1} parent=1 // pred_check
      _
    $region3: #{tpu_custom_call.1} parent=1 // pred_check_branch
      %13 = sbr.rel (0) target = $region5
    $region4: #{tpu_custom_call.1} parent=1 // pred_region
      %s15 = ssub.s32 128, 128
      %16 = vsyncadd [#allocation3], %s15
      %s18 = sshll.u32 [#allocation2], 4
      %s19 = int_to_ptr.vmem [resolvable:$true] %s18
      %21 = dma.hbm_to_vmem [thread:$0]  %s0, 128, %s19, [#allocation3]
    $region5: #{tpu_custom_call.1} parent=1 // pred_fallthru
      _
    // Predicated region
    $region6: #{tpu_custom_call.1} parent=1 // pred_check
      _
    $region7: #{tpu_custom_call.1} parent=1 // pred_check_branch
      %23 = sbr.rel (0) target = $region9
    $region8: #{tpu_custom_call.1} parent=1 // pred_region
      %s25 = ssub.s32 256, 256
      %26 = vsyncadd [#allocation5], %s25
      %s27 = sshll.u32 [#allocation4], 4
      %s28 = int_to_ptr.vmem [resolvable:$true] %s27
      %33 = dma.hbm_to_vmem [thread:$0]  %s1, 256, %s28, [#allocation5], 128, 128, 8
    $region9: #{tpu_custom_call.1} parent=1 // pred_fallthru
      _
    // Predicated region
    $region10: #{tpu_custom_call.1} parent=1 // pred_check
      _
    $region11: #{tpu_custom_call.1} parent=1 // pred_check_branch
      %35 = sbr.rel (0) target = $region13
    $region12: #{tpu_custom_call.1} parent=1 // pred_region
      _
    $region13: #{tpu_custom_call.1} parent=1 // pred_fallthru
      _
    // Predicated region
    $region14: #{tpu_custom_call.1} parent=1 // pred_check
      _
    $region15: #{tpu_custom_call.1} parent=1 // pred_check_branch
      %37 = sbr.rel (0) target = $region17
    $region16: #{tpu_custom_call.1} parent=1 // pred_region
      %s39 = ssub.s32 2048, 2048
      %40 = vsyncadd [#allocation5], %s39
      %s41 = sshll.u32 [#allocation6], 4
      %s42 = int_to_ptr.vmem [resolvable:$true] %s41
      %47 = dma.hbm_to_vmem [thread:$0]  %s3, 2048, %s42, [#allocation5], 128, 128, 8
    $region17: #{tpu_custom_call.1} parent=1 // pred_fallthru
      _
    // Predicated region
    $region18: #{tpu_custom_call.1} parent=1 // pred_check
      _
    $region19: #{tpu_custom_call.1} parent=1 // pred_check_branch
      %49 = sbr.rel (0) target = $region21
    $region20: #{tpu_custom_call.1} parent=1 // pred_region
      _
    $region21: #{tpu_custom_call.1} parent=1 // pred_fallthru
      _
    // Predicated region
    $region22: #{tpu_custom_call.1} parent=1 // pred_check
      _
    $region23: #{tpu_custom_call.1} parent=1 // pred_check_branch
      %51 = sbr.rel (0) target = $region25
    $region24: #{tpu_custom_call.1} parent=1 // pred_region
      %52 = dma.done [#allocation3], 128
    $region25: #{tpu_custom_call.1} parent=1 // pred_fallthru
      _
    // Predicated region
    $region26: #{tpu_custom_call.1} parent=1 // pred_check
      _
    $region27: #{tpu_custom_call.1} parent=1 // pred_check_branch
      %54 = sbr.rel (0) target = $region29
    $region28: #{tpu_custom_call.1} parent=1 // pred_region
      %55 = dma.done [#allocation5], 256
    $region29: #{tpu_custom_call.1} parent=1 // pred_fallthru
      _
    // Predicated region
    $region30: #{tpu_custom_call.1} parent=1 // pred_check
      _
    $region31: #{tpu_custom_call.1} parent=1 // pred_check_branch
      %57 = sbr.rel (0) target = $region33
    $region32: #{tpu_custom_call.1} parent=1 // pred_region
      %58 = dma.done [#allocation5], 2048
    $region33: #{tpu_custom_call.1} parent=1 // pred_fallthru
      _
    %v59 = vld [vmem:[#allocation2] sm:$0xff]
    %v60 = vld [vmem:[#allocation4] sm:$0xff]
    %v61 = vld [vmem:[#allocation4 + $0x8] sm:$0xff]
    %v62 = vld [vmem:[%s2] sm:$0x1]
    %v64 = vlaneseq
    %v65 = vshrl.u32 %v64, 7
    %v66 = vsub.s32 0, %v65
    %v67 = vrot.slane %v62, %v66
    %vm69 = vcmask 130048
    %v71 = vsel %vm69, %v59, 0
    %73 = vmatprep.subr.mxu0 0.0
    %74 = vmatpush1.msra.mxu0 %v60
    %75 = vmatprep.subr.mxu0 0.0
    %76 = vmatpush1.msra.mxu0 %v61
    %77 = vmatprep.subr.mxu0 0.0
    %78 = vmatpush1.msra.mxu0 0.0
    %79 = vmatprep.subr.mxu0 0.0
    %80 = vmatpush1.msra.mxu0 0.0
    %81 = vmatprep.subr.mxu0 0.0
    %82 = vmatpush1.msra.mxu0 0.0
    %83 = vmatprep.subr.mxu0 0.0
    %84 = vmatpush1.msra.mxu0 0.0
    %85 = vmatprep.subr.mxu0 0.0
    %86 = vmatpush1.msra.mxu0 0.0
    %87 = vmatprep.subr.mxu0 0.0
    %88 = vmatpush1.msra.mxu0 0.0
    %89 = vmatprep.subr.mxu0 0.0
    %90 = vmatpush1.msra.mxu0 0.0
    %91 = vmatprep.subr.mxu0 0.0
    %92 = vmatpush1.msra.mxu0 0.0
    %93 = vmatprep.subr.mxu0 0.0
    %94 = vmatpush1.msra.mxu0 0.0
    %95 = vmatprep.subr.mxu0 0.0
    %96 = vmatpush1.msra.mxu0 0.0
    %97 = vmatprep.subr.mxu0 0.0
    %98 = vmatpush1.msra.mxu0 0.0
    %99 = vmatprep.subr.mxu0 0.0
    %100 = vmatpush1.msra.mxu0 0.0
    %101 = vmatprep.subr.mxu0 0.0
    %102 = vmatpush1.msra.mxu0 0.0
    %103 = vmatprep.subr.mxu0 0.0
    %104 = vmatpush1.msra.mxu0 0.0
    %105 = vmatprep.subr.mxu0 0.0
    %106 = vmatpush1.msra.mxu0 0.0
    %107 = vmatprep.subr.mxu0 0.0
    %108 = vmatpush1.msra.mxu0 0.0
    %109 = vmatprep.subr.mxu0 0.0
    %110 = vmatpush1.msra.mxu0 0.0
    %111 = vmatprep.subr.mxu0 0.0
    %112 = vmatpush1.msra.mxu0 0.0
    %113 = vmatprep.subr.mxu0 0.0
    %114 = vmatpush1.msra.mxu0 0.0
    %115 = vmatprep.subr.mxu0 0.0
    %116 = vmatpush1.msra.mxu0 0.0
    %117 = vmatprep.subr.mxu0 0.0
    %118 = vmatpush1.msra.mxu0 0.0
    %119 = vmatprep.subr.mxu0 0.0
    %120 = vmatpush1.msra.mxu0 0.0
    %121 = vmatprep.subr.mxu0 0.0
    %122 = vmatpush1.msra.mxu0 0.0
    %123 = vmatprep.subr.mxu0 0.0
    %124 = vmatpush1.msra.mxu0 0.0
    %125 = vmatprep.subr.mxu0 0.0
    %126 = vmatpush1.msra.mxu0 0.0
    %127 = vmatprep.subr.mxu0 0.0
    %128 = vmatpush1.msra.mxu0 0.0
    %129 = vmatprep.subr.mxu0 0.0
    %130 = vmatpush1.msra.mxu0 0.0
    %131 = vmatprep.subr.mxu0 0.0
    %132 = vmatpush1.msra.mxu0 0.0
    %133 = vmatprep.subr.mxu0 0.0
    %134 = vmatpush1.msra.mxu0 0.0
    %135 = vmatprep.subr.mxu0 0.0
    %136 = vmatpush1.msra.mxu0 0.0
    %137 = vmatprep.mubr.f32.mxu0 0.0
    %138 = vmatmul.mubr.f32.gmra.mrb[0].mxu0 %v71
    %v139 = vpop.f32.mrb[0].mxu0
    %v140 = vadd.f32 %v67, %v139
    %v141 = vpop.f32.mrb[0].mxu0
    %142 = vdwg.mxu0
    %v143 = vmax.f32 %v140, 0.0
    %v144 = vld [vmem:[#allocation6] sm:$0xff]
    %v145 = vld [vmem:[#allocation6 + $0x8] sm:$0xff]
    %v146 = vld [vmem:[#allocation6 + $0x10] sm:$0xff]
    %v147 = vld [vmem:[#allocation6 + $0x18] sm:$0xff]
    %v148 = vld [vmem:[#allocation6 + $0x20] sm:$0xff]
    %v149 = vld [vmem:[#allocation6 + $0x28] sm:$0xff]
    %v150 = vld [vmem:[#allocation6 + $0x30] sm:$0xff]
    %v151 = vld [vmem:[#allocation6 + $0x38] sm:$0xff]
    %v152 = vld [vmem:[#allocation6 + $0x40] sm:$0xff]
    %v153 = vld [vmem:[#allocation6 + $0x48] sm:$0xff]
    %v154 = vld [vmem:[#allocation6 + $0x50] sm:$0xff]
    %v155 = vld [vmem:[#allocation6 + $0x58] sm:$0xff]
    %v156 = vld [vmem:[#allocation6 + $0x60] sm:$0xff]
    %v157 = vld [vmem:[#allocation6 + $0x68] sm:$0xff]
    %v158 = vld [vmem:[#allocation6 + $0x70] sm:$0xff]
    %v159 = vld [vmem:[#allocation6 + $0x78] sm:$0xff]
    %160 = vmatprep.subr.mxu0 0.0
    %161 = vmatpush1.msra.mxu0 %v144
    %162 = vmatprep.subr.mxu0 0.0
    %163 = vmatpush1.msra.mxu0 %v145
    %164 = vmatprep.subr.mxu0 0.0
    %165 = vmatpush1.msra.mxu0 %v146
    %166 = vmatprep.subr.mxu0 0.0
    %167 = vmatpush1.msra.mxu0 %v147
    %168 = vmatprep.subr.mxu0 0.0
    %169 = vmatpush1.msra.mxu0 %v148
    %170 = vmatprep.subr.mxu0 0.0
    %171 = vmatpush1.msra.mxu0 %v149
    %172 = vmatprep.subr.mxu0 0.0
    %173 = vmatpush1.msra.mxu0 %v150
    %174 = vmatprep.subr.mxu0 0.0
    %175 = vmatpush1.msra.mxu0 %v151
    %176 = vmatprep.subr.mxu0 0.0
    %177 = vmatpush1.msra.mxu0 %v152
    %178 = vmatprep.subr.mxu0 0.0
    %179 = vmatpush1.msra.mxu0 %v153
    %180 = vmatprep.subr.mxu0 0.0
    %181 = vmatpush1.msra.mxu0 %v154
    %182 = vmatprep.subr.mxu0 0.0
    %183 = vmatpush1.msra.mxu0 %v155
    %184 = vmatprep.subr.mxu0 0.0
    %185 = vmatpush1.msra.mxu0 %v156
    %186 = vmatprep.subr.mxu0 0.0
    %187 = vmatpush1.msra.mxu0 %v157
    %188 = vmatprep.subr.mxu0 0.0
    %189 = vmatpush1.msra.mxu0 %v158
    %190 = vmatprep.subr.mxu0 0.0
    %191 = vmatpush1.msra.mxu0 %v159
    %192 = vmatprep.subr.mxu0 0.0
    %193 = vmatpush1.msra.mxu0 0.0
    %194 = vmatprep.subr.mxu0 0.0
    %195 = vmatpush1.msra.mxu0 0.0
    %196 = vmatprep.subr.mxu0 0.0
    %197 = vmatpush1.msra.mxu0 0.0
    %198 = vmatprep.subr.mxu0 0.0
    %199 = vmatpush1.msra.mxu0 0.0
    %200 = vmatprep.subr.mxu0 0.0
    %201 = vmatpush1.msra.mxu0 0.0
    %202 = vmatprep.subr.mxu0 0.0
    %203 = vmatpush1.msra.mxu0 0.0
    %204 = vmatprep.subr.mxu0 0.0
    %205 = vmatpush1.msra.mxu0 0.0
    %206 = vmatprep.subr.mxu0 0.0
    %207 = vmatpush1.msra.mxu0 0.0
    %208 = vmatprep.subr.mxu0 0.0
    %209 = vmatpush1.msra.mxu0 0.0
    %210 = vmatprep.subr.mxu0 0.0
    %211 = vmatpush1.msra.mxu0 0.0
    %212 = vmatprep.subr.mxu0 0.0
    %213 = vmatpush1.msra.mxu0 0.0
    %214 = vmatprep.subr.mxu0 0.0
    %215 = vmatpush1.msra.mxu0 0.0
    %216 = vmatprep.subr.mxu0 0.0
    %217 = vmatpush1.msra.mxu0 0.0
    %218 = vmatprep.subr.mxu0 0.0
    %219 = vmatpush1.msra.mxu0 0.0
    %220 = vmatprep.subr.mxu0 0.0
    %221 = vmatpush1.msra.mxu0 0.0
    %222 = vmatprep.subr.mxu0 0.0
    %223 = vmatpush1.msra.mxu0 0.0
    %224 = vmatprep.mubr.f32.mxu0 0.0
    %225 = vmatmul.mubr.f32.gmra.mrb[0].mxu0 %v143
    %v226 = vpop.f32.mrb[0].mxu0
    %v227 = vadd.f32 0.0, %v226
    %v228 = vpop.f32.mrb[0].mxu0
    %229 = vdwg.mxu0
    %v230 = vld [vmem:[%s4] sm:$0x1]
    %v232 = vlaneseq
    %v233 = vshrl.u32 %v232, 7
    %v234 = vsub.s32 0, %v233
    %v235 = vrot.slane %v230, %v234
    %v237 = vadd.f32 %v227, %v235
    %vm238 = vcmask 31744
    %239 = vst.msk [vmem:[%s5] sm:$0xff] %vm238, %v237
    // Predicated region
    $region34: #{tpu_custom_call.1} parent=1 // pred_check
      _
    $region35: #{tpu_custom_call.1} parent=1 // pred_check_branch
      %241 = sbr.rel (0) target = $region37
    $region36: #{tpu_custom_call.1} parent=1 // pred_region
      _
    $region37: #{tpu_custom_call.1} parent=1 // pred_fallthru
      _
    // Predicated region
    $region38: #{tpu_custom_call.1} parent=1 // pred_check
      _
    $region39: #{tpu_custom_call.1} parent=1 // pred_check_branch
      %243 = sbr.rel (0) target = $region41
    $region40: #{tpu_custom_call.1} parent=1 // pred_region
      _
    $region41: #{tpu_custom_call.1} parent=1 // pred_fallthru
      _
    %244 = vsyncpa [#allocation3], 1
    %245 = vsyncpa [#allocation5], 1

</llo_original>
